<compile_context>
chip_gen: v7x
topology: tpu7x:2x2x1
jax: 0.10.0
libtpu: 0.0.40
codegen_flags: <defaults>
</compile_context>

<pallas_src>
import functools

import jax
import jax.numpy as jnp
from jax import lax
from jax.experimental import pallas as pl
from jax.experimental.pallas import tpu as pltpu


def _outhead_kernel(x_ref, wk0_ref, wk1_ref, wk2_ref, bconv_ref,
                    w1b_ref, b1b_ref, w2b_ref, b2b_ref, o_ref, *, T):
    """One grid step processes Bt batch elements.

    x_ref     : (Bt*T, D)        input rows, (batch-major, time-minor)
    wk*_ref   : (D, C1)          conv weight for tap k (k = 0, 1, 2)
    bconv_ref : (1, C1)          conv bias
    w1b_ref   : (Bt*H, Bt*T)     block-diagonal expert layer-1 weight (w1^T blocks)
    b1b_ref   : (Bt*H, 1)        layer-1 bias, tiled per batch
    w2b_ref   : (Bt*C2, Bt*H)    block-diagonal expert layer-2 weight (w2^T blocks)
    b2b_ref   : (Bt*C2, 1)       layer-2 bias, tiled per batch
    o_ref     : (1, Bt*C2, C1)   output slab, rows (batch-major, C2-minor)
    """
    x2 = x_ref[...]                                       # (Bt*T, D)
    n_rows = x2.shape[0]

    # Conv "padding=1" neighbours: sublane roll (XLU) + per-batch edge mask.
    #   row % T == 0     -> no t-1 neighbour (also kills cross-batch leakage)
    #   row % T == T-1   -> no t+1 neighbour
    tpos = lax.broadcasted_iota(jnp.int32, x2.shape, 0) % T
    xprev = jnp.where(tpos == 0, 0.0, pltpu.roll(x2, shift=1, axis=0))
    xnext = jnp.where(tpos == T - 1, 0.0,
                      pltpu.roll(x2, shift=n_rows - 1, axis=0))

    # Conv1d(k=3, pad=1): z[(b,t), c] = sum_k sum_d x[b, t+k-1, d] * W[c, d, k]
    z = (jnp.dot(xprev, wk0_ref[...], preferred_element_type=jnp.float32)
         + jnp.dot(x2, wk1_ref[...], preferred_element_type=jnp.float32)
         + jnp.dot(xnext, wk2_ref[...], preferred_element_type=jnp.float32)
         + bconv_ref[...])                                # (Bt*T, C1)

    # BasicExpert MLP over the time axis, all Bt batches at once via
    # block-diagonal weights (one matmul chain, no per-batch loop, no
    # unaligned lane stores).
    h = jnp.maximum(
        jnp.dot(w1b_ref[...], z, preferred_element_type=jnp.float32)
        + b1b_ref[...], 0.0)                              # (Bt*H, C1)
    y = (jnp.dot(w2b_ref[...], h, preferred_element_type=jnp.float32)
         + b2b_ref[...])                                  # (Bt*C2, C1)

    o_ref[0] = y.astype(o_ref.dtype)


def _block_diag(w, n):
    """(r, c) -> (n*r, n*c) with w repeated on the diagonal (XLA-side glue)."""
    r, c = w.shape
    eye = jnp.eye(n, dtype=w.dtype)
    return (eye[:, None, :, None] * w[None, :, None, :]).reshape(n * r, n * c)


@functools.partial(jax.jit, static_argnames=("num_node", "out_dim"))
def outhead_traffic(x, wconv, bconv, w1, b1, w2, b2, *, num_node, out_dim):
    """x: (B, T, D) float32.  Returns (B, num_node, out_channels, out_dim)."""
    B, T, D = x.shape
    C1 = wconv.shape[0]            # out_dim * num_node
    H = w1.shape[1]                # 2 * T
    C2 = w2.shape[1]               # out_channels

    # Batch elements per grid step; pad B up to a multiple if needed.
    Bt = B if B <= 8 else 8
    Bp = ((B + Bt - 1) // Bt) * Bt
    if Bp != B:
        x = jnp.pad(x, ((0, Bp - B), (0, 0), (0, 0)))
    G = Bp // Bt

    # XLA-side layout glue (all cheap, done once per call):
    x2 = x.reshape(Bp * T, D)                                # rows = (b, t)
    w_taps = jnp.transpose(wconv, (2, 1, 0))                 # (3, D, C1)
    wk0, wk1, wk2 = w_taps[0], w_taps[1], w_taps[2]
    bconv_r = bconv.reshape(1, C1)
    w1b = _block_diag(w1.T, Bt)                              # (Bt*H, Bt*T)
    b1b = jnp.tile(b1.reshape(H, 1), (Bt, 1))                # (Bt*H, 1)
    w2b = _block_diag(w2.T, Bt)                              # (Bt*C2, Bt*H)
    b2b = jnp.tile(b2.reshape(C2, 1), (Bt, 1))               # (Bt*C2, 1)

    flops = 2 * Bp * C1 * (3 * D * T + T * H + H * C2)
    bytes_accessed = 4 * (Bp * T * D + 3 * D * C1 + C1
                          + Bt * H * Bt * T + Bt * H
                          + Bt * C2 * Bt * H + Bt * C2
                          + G * Bt * C2 * C1)
    cost = pl.CostEstimate(flops=flops, transcendentals=0,
                           bytes_accessed=bytes_accessed)

    kernel = functools.partial(_outhead_kernel, T=T)

    out = pl.pallas_call(
        kernel,
        out_shape=jax.ShapeDtypeStruct((G, Bt * C2, C1), jnp.float32),
        grid_spec=pltpu.PrefetchScalarGridSpec(
            num_scalar_prefetch=0,
            grid=(G,),
            in_specs=[
                pl.BlockSpec((Bt * T, D), lambda i: (i, 0)),          # x slab
                pl.BlockSpec((D, C1), lambda i: (0, 0)),              # conv tap 0
                pl.BlockSpec((D, C1), lambda i: (0, 0)),              # conv tap 1
                pl.BlockSpec((D, C1), lambda i: (0, 0)),              # conv tap 2
                pl.BlockSpec((1, C1), lambda i: (0, 0)),              # conv bias
                pl.BlockSpec((Bt * H, Bt * T), lambda i: (0, 0)),     # w1 blkdiag
                pl.BlockSpec((Bt * H, 1), lambda i: (0, 0)),          # b1
                pl.BlockSpec((Bt * C2, Bt * H), lambda i: (0, 0)),    # w2 blkdiag
                pl.BlockSpec((Bt * C2, 1), lambda i: (0, 0)),         # b2
            ],
            out_specs=pl.BlockSpec((1, Bt * C2, C1), lambda i: (i, 0, 0)),
        ),
        compiler_params=pltpu.CompilerParams(
            dimension_semantics=("parallel",)),
        cost_estimate=cost,
    )(x2, wk0, wk1, wk2, bconv_r, w1b, b1b, w2b, b2b)

    # Glue: (G, Bt*C2, C1) -> (B, C1, C2) -> view(B, num_node, out_dim, C2)
    #       -> transpose(2, 3)   (all cheap XLA layout ops)
    y = jnp.transpose(out.reshape(Bp, C2, C1)[:B], (0, 2, 1))    # (B, C1, C2)
    return jnp.transpose(y.reshape(B, num_node, out_dim, C2), (0, 1, 3, 2))


def _reference(x, wconv, bconv, w1, b1, w2, b2, num_node, out_dim):
    """Pure-JAX reference of the PyTorch forward (highest matmul precision)."""
    hp = lax.Precision.HIGHEST
    B, T, D = x.shape
    xt = jnp.transpose(x, (0, 2, 1))                          # (B, D, T)
    xp = jnp.pad(xt, ((0, 0), (0, 0), (1, 1)))                # pad=1
    taps = jnp.stack([xp[:, :, k:k + T] for k in range(3)], axis=-1)  # (B,D,T,3)
    z = jnp.einsum('cdk,bdtk->bct', wconv, taps, precision=hp) \
        + bconv[None, :, None]
    h = jnp.maximum(jnp.einsum('bct,th->bch', z, w1, precision=hp) + b1, 0.0)
    y = jnp.einsum('bch,hf->bcf', h, w2, precision=hp) + b2
    C2 = w2.shape[1]
    return jnp.transpose(y.reshape(B, num_node, out_dim, C2), (0, 1, 3, 2))


if __name__ == "__main__":
    # Small, self-consistent shapes:
    #   in_dim D = 32, seq T = in_channels = 8, out_dim = 4, num_node = 5,
    #   out_channels = 6  =>  conv out C1 = out_dim*num_node = 20, hidden H = 16.
    B, T, D = 2, 8, 32
    out_dim, num_node, out_channels = 4, 5, 6
    C1, H = out_dim * num_node, 2 * T

    key = jax.random.PRNGKey(0)
    kx, kw0, kb0, kw1, kb1, kw2, kb2 = jax.random.split(key, 7)

    x = jax.random.normal(kx, (B, T, D), dtype=jnp.float32)
    # Deterministic synthetic parameters (PyTorch shapes):
    wconv = 0.1 * jax.random.normal(kw0, (C1, D, 3), dtype=jnp.float32)  # Conv1d.weight
    bconv = 0.1 * jax.random.normal(kb0, (C1,), dtype=jnp.float32)       # Conv1d.bias
    w1 = 0.1 * jax.random.normal(kw1, (T, H), dtype=jnp.float32)         # Linear(T, 2T).weight.T
    b1 = 0.1 * jax.random.normal(kb1, (H,), dtype=jnp.float32)
    w2 = 0.1 * jax.random.normal(kw2, (H, out_channels), dtype=jnp.float32)
    b2 = 0.1 * jax.random.normal(kb2, (out_channels,), dtype=jnp.float32)

    out = outhead_traffic(x, wconv, bconv, w1, b1, w2, b2,
                          num_node=num_node, out_dim=out_dim)
    out = jax.block_until_ready(out)

    ref = _reference(x, wconv, bconv, w1, b1, w2, b2, num_node, out_dim)
    assert out.shape == (B, num_node, out_channels, out_dim), out.shape
    # Tolerance covers possible reduced-precision MXU passes for f32 matmuls.
    assert jnp.allclose(out, ref, rtol=5e-3, atol=5e-3), "mismatch vs reference"

    print("KERNEL_OK")
</pallas_src>

<mosaic_0001>
module attributes {stable_mosaic.version = 11 : i64} {
  func.func @_outhead_kernel(%arg0: i32, %arg1: memref<16x32xf32, #tpu.memory_space<vmem>>, %arg2: memref<32x20xf32, #tpu.memory_space<vmem>>, %arg3: memref<32x20xf32, #tpu.memory_space<vmem>>, %arg4: memref<32x20xf32, #tpu.memory_space<vmem>>, %arg5: memref<1x20xf32, #tpu.memory_space<vmem>>, %arg6: memref<32x16xf32, #tpu.memory_space<vmem>>, %arg7: memref<32x1xf32, #tpu.memory_space<vmem>>, %arg8: memref<12x32xf32, #tpu.memory_space<vmem>>, %arg9: memref<12x1xf32, #tpu.memory_space<vmem>>, %arg10: memref<1x12x20xf32, #tpu.memory_space<vmem>>) attributes {dimension_semantics = [#tpu.dimension_semantics<parallel>], iteration_bounds = array<i64: 1>, scalar_prefetch = 0 : i64, scratch_operands = 0 : i64, tpu.core_type = #tpu.core_type<tc>, window_params = [{transform_indices = @transform_0, window_bounds = array<i64: 16, 32>}, {pipeline_mode = #tpu.pipeline_mode<synchronous>, transform_indices = @transform_1, window_bounds = array<i64: 32, 20>}, {pipeline_mode = #tpu.pipeline_mode<synchronous>, transform_indices = @transform_2, window_bounds = array<i64: 32, 20>}, {pipeline_mode = #tpu.pipeline_mode<synchronous>, transform_indices = @transform_3, window_bounds = array<i64: 32, 20>}, {pipeline_mode = #tpu.pipeline_mode<synchronous>, transform_indices = @transform_4, window_bounds = array<i64: 1, 20>}, {pipeline_mode = #tpu.pipeline_mode<synchronous>, transform_indices = @transform_5, window_bounds = array<i64: 32, 16>}, {pipeline_mode = #tpu.pipeline_mode<synchronous>, transform_indices = @transform_6, window_bounds = array<i64: 32, 1>}, {pipeline_mode = #tpu.pipeline_mode<synchronous>, transform_indices = @transform_7, window_bounds = array<i64: 12, 32>}, {pipeline_mode = #tpu.pipeline_mode<synchronous>, transform_indices = @transform_8, window_bounds = array<i64: 12, 1>}, {transform_indices = @transform_9, window_bounds = array<i64: 1, 12, 20>}]} {
    %c0 = arith.constant 0 : index
    %c0_0 = arith.constant 0 : index
    %0 = vector.load %arg1[%c0, %c0_0] : memref<16x32xf32, #tpu.memory_space<vmem>>, vector<16x32xf32>
    %1 = tpu.iota {dimensions = array<i32: 0>} : vector<16x32xi32>
    %c8_i32 = arith.constant 8 : i32
    %c0_i32 = arith.constant 0 : i32
    %2 = arith.cmpi eq, %c8_i32, %c0_i32 : i32
    %c1_i32 = arith.constant 1 : i32
    %3 = arith.select %2, %c1_i32, %c8_i32 : i32
    %4 = vector.broadcast %3 : i32 to vector<16x32xi32>
    %5 = arith.remsi %1, %4 : vector<16x32xi32>
    %c0_i32_1 = arith.constant 0 : i32
    %6 = vector.broadcast %c0_i32_1 : i32 to vector<16x32xi32>
    %7 = arith.cmpi ne, %5, %6 : vector<16x32xi32>
    %c0_i32_2 = arith.constant 0 : i32
    %8 = vector.broadcast %c0_i32_2 : i32 to vector<16x32xi32>
    %9 = arith.cmpi slt, %5, %8 : vector<16x32xi32>
    %c0_i32_3 = arith.constant 0 : i32
    %10 = arith.cmpi slt, %3, %c0_i32_3 : i32
    %11 = vector.broadcast %10 : i1 to vector<16x32xi1>
    %12 = vector.broadcast %11 : vector<16x32xi1> to vector<16x32xi1>
    %13 = arith.xori %9, %12 : vector<16x32xi1>
    %14 = arith.andi %13, %7 : vector<16x32xi1>
    %15 = vector.broadcast %3 : i32 to vector<16x32xi32>
    %16 = arith.addi %5, %15 : vector<16x32xi32>
    %17 = arith.select %14, %16, %5 : vector<16x32xi1>, vector<16x32xi32>
    %c0_i32_4 = arith.constant 0 : i32
    %18 = vector.broadcast %c0_i32_4 : i32 to vector<16x32xi32>
    %19 = arith.cmpi eq, %17, %18 : vector<16x32xi32>
    %c1_i32_5 = arith.constant 1 : i32
    %20 = tpu.dynamic_rotate %0 by %c1_i32_5 dim 0 : vector<16x32xf32>, i32 -> vector<16x32xf32>
    %cst = arith.constant 0.000000e+00 : f32
    %21 = vector.broadcast %cst : f32 to vector<16x32xf32>
    %22 = arith.select %19, %21, %20 : vector<16x32xi1>, vector<16x32xf32>
    %c7_i32 = arith.constant 7 : i32
    %23 = vector.broadcast %c7_i32 : i32 to vector<16x32xi32>
    %24 = arith.cmpi eq, %17, %23 : vector<16x32xi32>
    %c15_i32 = arith.constant 15 : i32
    %25 = tpu.dynamic_rotate %0 by %c15_i32 dim 0 : vector<16x32xf32>, i32 -> vector<16x32xf32>
    %cst_6 = arith.constant 0.000000e+00 : f32
    %26 = vector.broadcast %cst_6 : f32 to vector<16x32xf32>
    %27 = arith.select %24, %26, %25 : vector<16x32xi1>, vector<16x32xf32>
    %c0_7 = arith.constant 0 : index
    %c0_8 = arith.constant 0 : index
    %28 = vector.load %arg2[%c0_7, %c0_8] : memref<32x20xf32, #tpu.memory_space<vmem>>, vector<32x20xf32>
    %cst_9 = arith.constant dense<0.000000e+00> : vector<16x20xf32>
    %29 = tpu.matmul %22, %28, %cst_9 {dimension_numbers = #tpu.dot_dimension_numbers<[1], [0], [0], [1], [0, 0, 1, 1], [], []>} : vector<16x32xf32>, vector<32x20xf32>, vector<16x20xf32> -> vector<16x20xf32>
    %c0_10 = arith.constant 0 : index
    %c0_11 = arith.constant 0 : index
    %30 = vector.load %arg3[%c0_10, %c0_11] : memref<32x20xf32, #tpu.memory_space<vmem>>, vector<32x20xf32>
    %cst_12 = arith.constant dense<0.000000e+00> : vector<16x20xf32>
    %31 = tpu.matmul %0, %30, %cst_12 {dimension_numbers = #tpu.dot_dimension_numbers<[1], [0], [0], [1], [0, 0, 1, 1], [], []>} : vector<16x32xf32>, vector<32x20xf32>, vector<16x20xf32> -> vector<16x20xf32>
    %32 = arith.addf %29, %31 : vector<16x20xf32>
    %c0_13 = arith.constant 0 : index
    %c0_14 = arith.constant 0 : index
    %33 = vector.load %arg4[%c0_13, %c0_14] : memref<32x20xf32, #tpu.memory_space<vmem>>, vector<32x20xf32>
    %cst_15 = arith.constant dense<0.000000e+00> : vector<16x20xf32>
    %34 = tpu.matmul %27, %33, %cst_15 {dimension_numbers = #tpu.dot_dimension_numbers<[1], [0], [0], [1], [0, 0, 1, 1], [], []>} : vector<16x32xf32>, vector<32x20xf32>, vector<16x20xf32> -> vector<16x20xf32>
    %35 = arith.addf %32, %34 : vector<16x20xf32>
    %c0_16 = arith.constant 0 : index
    %c0_17 = arith.constant 0 : index
    %36 = vector.load %arg5[%c0_16, %c0_17] : memref<1x20xf32, #tpu.memory_space<vmem>>, vector<1x20xf32>
    %37 = vector.broadcast %36 : vector<1x20xf32> to vector<16x20xf32>
    %38 = arith.addf %35, %37 : vector<16x20xf32>
    %c0_18 = arith.constant 0 : index
    %c0_19 = arith.constant 0 : index
    %39 = vector.load %arg6[%c0_18, %c0_19] : memref<32x16xf32, #tpu.memory_space<vmem>>, vector<32x16xf32>
    %cst_20 = arith.constant dense<0.000000e+00> : vector<32x20xf32>
    %40 = tpu.matmul %39, %38, %cst_20 {dimension_numbers = #tpu.dot_dimension_numbers<[1], [0], [0], [1], [0, 0, 1, 1], [], []>} : vector<32x16xf32>, vector<16x20xf32>, vector<32x20xf32> -> vector<32x20xf32>
    %c0_21 = arith.constant 0 : index
    %c0_22 = arith.constant 0 : index
    %41 = vector.load %arg7[%c0_21, %c0_22] : memref<32x1xf32, #tpu.memory_space<vmem>>, vector<32x1xf32>
    %42 = vector.broadcast %41 : vector<32x1xf32> to vector<32x20xf32>
    %43 = arith.addf %40, %42 : vector<32x20xf32>
    %cst_23 = arith.constant 0.000000e+00 : f32
    %44 = vector.broadcast %cst_23 : f32 to vector<32x20xf32>
    %45 = arith.maximumf %43, %44 : vector<32x20xf32>
    %c0_24 = arith.constant 0 : index
    %c0_25 = arith.constant 0 : index
    %46 = vector.load %arg8[%c0_24, %c0_25] : memref<12x32xf32, #tpu.memory_space<vmem>>, vector<12x32xf32>
    %cst_26 = arith.constant dense<0.000000e+00> : vector<12x20xf32>
    %47 = tpu.matmul %46, %45, %cst_26 {dimension_numbers = #tpu.dot_dimension_numbers<[1], [0], [0], [1], [0, 0, 1, 1], [], []>} : vector<12x32xf32>, vector<32x20xf32>, vector<12x20xf32> -> vector<12x20xf32>
    %c0_27 = arith.constant 0 : index
    %c0_28 = arith.constant 0 : index
    %48 = vector.load %arg9[%c0_27, %c0_28] : memref<12x1xf32, #tpu.memory_space<vmem>>, vector<12x1xf32>
    %49 = vector.broadcast %48 : vector<12x1xf32> to vector<12x20xf32>
    %50 = arith.addf %47, %49 : vector<12x20xf32>
    %c0_29 = arith.constant 0 : index
    %c0_30 = arith.constant 0 : index
    %c0_31 = arith.constant 0 : index
    %51 = vector.load %arg10[%c0_29, %c0_30, %c0_31] : memref<1x12x20xf32, #tpu.memory_space<vmem>>, vector<1x12x20xf32>
    %52 = vector.shape_cast %51 : vector<1x12x20xf32> to vector<12x20xf32>
    %53 = vector.shape_cast %50 : vector<12x20xf32> to vector<1x12x20xf32>
    tpu.vector_store %arg10[%c0_29, %c0_30, %c0_31], %53 {strides = array<i32>} : memref<1x12x20xf32, #tpu.memory_space<vmem>>, vector<1x12x20xf32>,
    return
  }
  func.func @transform_0(%arg0: i32) -> (i32, i32) {
    %c0_i32 = arith.constant 0 : i32
    %c0_i32_0 = arith.constant 0 : i32
    return %arg0, %c0_i32 : i32, i32
  }
  func.func @transform_1(%arg0: i32) -> (i32, i32) {
    %c0_i32 = arith.constant 0 : i32
    %c0_i32_0 = arith.constant 0 : i32
    %c0_i32_1 = arith.constant 0 : i32
    return %c0_i32, %c0_i32_0 : i32, i32
  }
  func.func @transform_2(%arg0: i32) -> (i32, i32) {
    %c0_i32 = arith.constant 0 : i32
    %c0_i32_0 = arith.constant 0 : i32
    %c0_i32_1 = arith.constant 0 : i32
    return %c0_i32, %c0_i32_0 : i32, i32
  }
  func.func @transform_3(%arg0: i32) -> (i32, i32) {
    %c0_i32 = arith.constant 0 : i32
    %c0_i32_0 = arith.constant 0 : i32
    %c0_i32_1 = arith.constant 0 : i32
    return %c0_i32, %c0_i32_0 : i32, i32
  }
  func.func @transform_4(%arg0: i32) -> (i32, i32) {
    %c0_i32 = arith.constant 0 : i32
    %c0_i32_0 = arith.constant 0 : i32
    %c0_i32_1 = arith.constant 0 : i32
    return %c0_i32, %c0_i32_0 : i32, i32
  }
  func.func @transform_5(%arg0: i32) -> (i32, i32) {
    %c0_i32 = arith.constant 0 : i32
    %c0_i32_0 = arith.constant 0 : i32
    %c0_i32_1 = arith.constant 0 : i32
    return %c0_i32, %c0_i32_0 : i32, i32
  }
  func.func @transform_6(%arg0: i32) -> (i32, i32) {
    %c0_i32 = arith.constant 0 : i32
    %c0_i32_0 = arith.constant 0 : i32
    %c0_i32_1 = arith.constant 0 : i32
    return %c0_i32, %c0_i32_0 : i32, i32
  }
  func.func @transform_7(%arg0: i32) -> (i32, i32) {
    %c0_i32 = arith.constant 0 : i32
    %c0_i32_0 = arith.constant 0 : i32
    %c0_i32_1 = arith.constant 0 : i32
    return %c0_i32, %c0_i32_0 : i32, i32
  }
  func.func @transform_8(%arg0: i32) -> (i32, i32) {
    %c0_i32 = arith.constant 0 : i32
    %c0_i32_0 = arith.constant 0 : i32
    %c0_i32_1 = arith.constant 0 : i32
    return %c0_i32, %c0_i32_0 : i32, i32
  }
  func.func @transform_9(%arg0: i32) -> (i32, i32, i32) {
    %c0_i32 = arith.constant 0 : i32
    %c0_i32_0 = arith.constant 0 : i32
    %c0_i32_1 = arith.constant 0 : i32
    return %arg0, %c0_i32, %c0_i32_0 : i32, i32, i32
  }
}

</mosaic_0001>

<llo_original>
// kernel: outhead_traffic.1
$region0: #{outhead_traffic.1}
  #allocation0 [shape = 'u32[]', space=smem, size = 0x4, offset = 0x4, fixed_abs, tag = 'smem constant byte address 0x4 - core index']
  #allocation1 [shape = 'u32[144,128]{1,0:T(1,128)}', space=vmem, size = 0x12000, scoped, tag = 'internal scratch']
  %s0 = inlined_call_operand.vmem [shape: f32[16,32], index: 0, kind: input, shape index: {}]
  %s1 = inlined_call_operand.vmem [shape: f32[32,20], index: 1, kind: input, shape index: {}]
  %s2 = inlined_call_operand.vmem [shape: f32[32,20], index: 2, kind: input, shape index: {}]
  %s3 = inlined_call_operand.vmem [shape: f32[32,20], index: 3, kind: input, shape index: {}]
  %s4 = inlined_call_operand.vmem [shape: f32[1,20], index: 4, kind: input, shape index: {}]
  %s5 = inlined_call_operand.vmem [shape: f32[32,16], index: 5, kind: input, shape index: {}]
  %s6 = inlined_call_operand.vmem [shape: f32[32,1], index: 6, kind: input, shape index: {}]
  %s7 = inlined_call_operand.vmem [shape: f32[12,32], index: 7, kind: input, shape index: {}]
  %s8 = inlined_call_operand.vmem [shape: f32[12,1], index: 8, kind: input, shape index: {}]
  %s9 = inlined_call_operand.vmem [shape: f32[1,12,20], index: 9, kind: output, shape index: {}]
  %s10 = sld [smem:[#allocation0]]
  $region46: #{outhead_traffic.1} parent=0
    _
  %s12 = ssub.s32 1, %s10
  %s13 = scalar_select 0, %s12, %s10
  // Predicated region
  $region2: #{outhead_traffic.1} parent=0 // pred_check
    _
  $region3: #{outhead_traffic.1} parent=0 // pred_check_branch
    %15 = sbr.rel (0) target = $region5
  $region4: #{outhead_traffic.1} parent=0 // pred_region
    _
  $region5: #{outhead_traffic.1} parent=0 // pred_fallthru
    _
  // Predicated region
  $region6: #{outhead_traffic.1} parent=0 // pred_check
    _
  $region7: #{outhead_traffic.1} parent=0 // pred_check_branch
    %17 = sbr.rel (0) target = $region9
  $region8: #{outhead_traffic.1} parent=0 // pred_region
    _
  $region9: #{outhead_traffic.1} parent=0 // pred_fallthru
    _
  // Predicated region
  $region10: #{outhead_traffic.1} parent=0 // pred_check
    _
  $region11: #{outhead_traffic.1} parent=0 // pred_check_branch
    %19 = sbr.rel (0) target = $region13
  $region12: #{outhead_traffic.1} parent=0 // pred_region
    _
  $region13: #{outhead_traffic.1} parent=0 // pred_fallthru
    _
  // Predicated region
  $region14: #{outhead_traffic.1} parent=0 // pred_check
    _
  $region15: #{outhead_traffic.1} parent=0 // pred_check_branch
    %21 = sbr.rel (0) target = $region17
  $region16: #{outhead_traffic.1} parent=0 // pred_region
    _
  $region17: #{outhead_traffic.1} parent=0 // pred_fallthru
    _
  // Predicated region
  $region18: #{outhead_traffic.1} parent=0 // pred_check
    _
  $region19: #{outhead_traffic.1} parent=0 // pred_check_branch
    %23 = sbr.rel (0) target = $region21
  $region20: #{outhead_traffic.1} parent=0 // pred_region
    _
  $region21: #{outhead_traffic.1} parent=0 // pred_fallthru
    _
  // Predicated region
  $region22: #{outhead_traffic.1} parent=0 // pred_check
    _
  $region23: #{outhead_traffic.1} parent=0 // pred_check_branch
    %25 = sbr.rel (0) target = $region25
  $region24: #{outhead_traffic.1} parent=0 // pred_region
    _
  $region25: #{outhead_traffic.1} parent=0 // pred_fallthru
    _
  // Predicated region
  $region26: #{outhead_traffic.1} parent=0 // pred_check
    _
  $region27: #{outhead_traffic.1} parent=0 // pred_check_branch
    %27 = sbr.rel (0) target = $region29
  $region28: #{outhead_traffic.1} parent=0 // pred_region
    _
  $region29: #{outhead_traffic.1} parent=0 // pred_fallthru
    _
  // Predicated region
  $region30: #{outhead_traffic.1} parent=0 // pred_check
    _
  $region31: #{outhead_traffic.1} parent=0 // pred_check_branch
    %29 = sbr.rel (0) target = $region33
  $region32: #{outhead_traffic.1} parent=0 // pred_region
    _
  $region33: #{outhead_traffic.1} parent=0 // pred_fallthru
    _
  // Predicated region
  $region34: #{outhead_traffic.1} parent=0 // pred_check
    _
  $region35: #{outhead_traffic.1} parent=0 // pred_check_branch
    %31 = sbr.rel (0) target = $region37
  $region36: #{outhead_traffic.1} parent=0 // pred_region
    _
  $region37: #{outhead_traffic.1} parent=0 // pred_fallthru
    _
  %v32 = vld [vmem:[%s0] sm:$0xff]
  %v33 = vld [vmem:[%s0 + $0x8] sm:$0xff]
  %v34 = vlaneseq
  %v35 = vshrl.u32 %v34, 7
  %v36 = vadd.s32 %v35, 8
  %vm37 = vcmp.lt.s32.totalorder %v35, 0
  %v38 = vsub.s32 0, %v35
  %v39 = vsel %vm37, %v38, %v35
  %v40 = vshrl.u32 %v39, 3
  %v41 = vand.u32 %v39, 7
  %v42 = vsub.s32 0, %v41
  %v43 = vsel %vm37, %v42, %v41
  %vm44 = vcmp.lt.s32.totalorder %v36, 0
  %v45 = vsub.s32 0, %v36
  %v46 = vsel %vm44, %v45, %v36
  %v47 = vshrl.u32 %v46, 3
  %v48 = vand.u32 %v46, 7
  %v49 = vsub.s32 0, %v48
  %v50 = vsel %vm44, %v49, %v48
  %vm51 = vcmp.ne.s32.totalorder %v43, 0
  %vm52 = vcmp.ne.s32.totalorder %v50, 0
  %vm53 = vcmp.lt.s32.totalorder %v43, 0
  %vm54 = vcmp.lt.s32.totalorder %v50, 0
  %vm55 = vmand %vm53, %vm51
  %vm56 = vmand %vm54, %vm52
  %v57 = vadd.s32 %v43, 8
  %v58 = vadd.s32 %v50, 8
  %v59 = vsel %vm55, %v57, %v43
  %v60 = vsel %vm56, %v58, %v50
  %vm61 = vcmp.eq.s32.totalorder %v59, 0
  %vm62 = vcmp.eq.s32.totalorder %v60, 0
  %v63 = vrot.slane %v32, 7
  %v64 = vrot.slane %v33, 7
  %vm65 = vcmp.lt.s32.totalorder %v35, 1
  %v66 = vsel %vm65, %v63, %v64
  %v67 = vsel %vm65, %v64, %v63
  %v68 = vsel %vm61, 0.0, %v67
  %v69 = vsel %vm62, 0.0, %v66
  %vm70 = vcmp.eq.s32.totalorder %v59, 7
  %vm71 = vcmp.eq.s32.totalorder %v60, 7
  %v72 = vrot.slane %v32, 1
  %v73 = vrot.slane %v33, 1
  %vm74 = vcmp.lt.s32.totalorder %v35, 7
  %v75 = vsel %vm74, %v72, %v73
  %v76 = vsel %vm74, %v73, %v72
  %v77 = vsel %vm70, 0.0, %v75
  %v78 = vsel %vm71, 0.0, %v76
  %v79 = vld [vmem:[%s1] sm:$0xff]
  %v80 = vld [vmem:[%s1 + $0x8] sm:$0xff]
  %v81 = vld [vmem:[%s1 + $0x10] sm:$0xff]
  %v82 = vld [vmem:[%s1 + $0x18] sm:$0xff]
  %v83 = vld [vmem:[%s2] sm:$0xff]
  %v84 = vld [vmem:[%s2 + $0x8] sm:$0xff]
  %v85 = vld [vmem:[%s2 + $0x10] sm:$0xff]
  %v86 = vld [vmem:[%s2 + $0x18] sm:$0xff]
  %vm87 = vcmask 261120
  %v89 = vsel %vm87, %v32, 0
  %v92 = vsel %vm87, %v33, 0
  %94 = vmatprep.subr.mxu0 0.0
  %95 = vmatpush1.msra.mxu0 %v83
  %96 = vmatprep.subr.mxu0 0.0
  %97 = vmatpush1.msra.mxu0 %v84
  %98 = vmatprep.subr.mxu0 0.0
  %99 = vmatpush1.msra.mxu0 %v85
  %100 = vmatprep.subr.mxu0 0.0
  %101 = vmatpush1.msra.mxu0 %v86
  %102 = vmatprep.subr.mxu0 0.0
  %103 = vmatpush1.msra.mxu0 0.0
  %104 = vmatprep.subr.mxu0 0.0
  %105 = vmatpush1.msra.mxu0 0.0
  %106 = vmatprep.subr.mxu0 0.0
  %107 = vmatpush1.msra.mxu0 0.0
  %108 = vmatprep.subr.mxu0 0.0
  %109 = vmatpush1.msra.mxu0 0.0
  %110 = vmatprep.subr.mxu0 0.0
  %111 = vmatpush1.msra.mxu0 0.0
  %112 = vmatprep.subr.mxu0 0.0
  %113 = vmatpush1.msra.mxu0 0.0
  %114 = vmatprep.subr.mxu0 0.0
  %115 = vmatpush1.msra.mxu0 0.0
  %116 = vmatprep.subr.mxu0 0.0
  %117 = vmatpush1.msra.mxu0 0.0
  %118 = vmatprep.subr.mxu0 0.0
  %119 = vmatpush1.msra.mxu0 0.0
  %120 = vmatprep.subr.mxu0 0.0
  %121 = vmatpush1.msra.mxu0 0.0
  %122 = vmatprep.subr.mxu0 0.0
  %123 = vmatpush1.msra.mxu0 0.0
  %124 = vmatprep.subr.mxu0 0.0
  %125 = vmatpush1.msra.mxu0 0.0
  %126 = vmatprep.subr.mxu0 0.0
  %127 = vmatpush1.msra.mxu0 0.0
  %128 = vmatprep.subr.mxu0 0.0
  %129 = vmatpush1.msra.mxu0 0.0
  %130 = vmatprep.subr.mxu0 0.0
  %131 = vmatpush1.msra.mxu0 0.0
  %132 = vmatprep.subr.mxu0 0.0
  %133 = vmatpush1.msra.mxu0 0.0
  %134 = vmatprep.subr.mxu0 0.0
  %135 = vmatpush1.msra.mxu0 0.0
  %136 = vmatprep.subr.mxu0 0.0
  %137 = vmatpush1.msra.mxu0 0.0
  %138 = vmatprep.subr.mxu0 0.0
  %139 = vmatpush1.msra.mxu0 0.0
  %140 = vmatprep.subr.mxu0 0.0
  %141 = vmatpush1.msra.mxu0 0.0
  %142 = vmatprep.subr.mxu0 0.0
  %143 = vmatpush1.msra.mxu0 0.0
  %144 = vmatprep.subr.mxu0 0.0
  %145 = vmatpush1.msra.mxu0 0.0
  %146 = vmatprep.subr.mxu0 0.0
  %147 = vmatpush1.msra.mxu0 0.0
  %148 = vmatprep.subr.mxu0 0.0
  %149 = vmatpush1.msra.mxu0 0.0
  %150 = vmatprep.subr.mxu0 0.0
  %151 = vmatpush1.msra.mxu0 0.0
  %152 = vmatprep.subr.mxu0 0.0
  %153 = vmatpush1.msra.mxu0 0.0
  %154 = vmatprep.subr.mxu0 0.0
  %155 = vmatpush1.msra.mxu0 0.0
  %156 = vmatprep.subr.mxu0 0.0
  %157 = vmatpush1.msra.mxu0 0.0
  %158 = vmatprep.mubr.f32.mxu0 0.0
  %159 = vmatmul.mubr.f32.gmra.mrb[0].mxu0 %v89
  %v160 = vpop.f32.mrb[0].mxu0
  %v161 = vadd.f32 0.0, %v160
  %v162 = vpop.f32.mrb[0].mxu0
  %163 = vmatprep.mubr.f32.mxu0 0.0
  %164 = vmatmul.mubr.f32.gmra.mrb[0].mxu0 %v92
  %v165 = vpop.f32.mrb[0].mxu0
  %v166 = vadd.f32 0.0, %v165
  %v167 = vpop.f32.mrb[0].mxu0
  %168 = vdwg.mxu0
  %v170 = vsel %vm87, %v68, 0
  %v173 = vsel %vm87, %v69, 0
  %175 = vmatprep.subr.mxu0 0.0
  %176 = vmatpush1.msra.mxu0 %v79
  %177 = vmatprep.subr.mxu0 0.0
  %178 = vmatpush1.msra.mxu0 %v80
  %179 = vmatprep.subr.mxu0 0.0
  %180 = vmatpush1.msra.mxu0 %v81
  %181 = vmatprep.subr.mxu0 0.0
  %182 = vmatpush1.msra.mxu0 %v82
  %183 = vmatprep.subr.mxu0 0.0
  %184 = vmatpush1.msra.mxu0 0.0
  %185 = vmatprep.subr.mxu0 0.0
  %186 = vmatpush1.msra.mxu0 0.0
  %187 = vmatprep.subr.mxu0 0.0
  %188 = vmatpush1.msra.mxu0 0.0
  %189 = vmatprep.subr.mxu0 0.0
  %190 = vmatpush1.msra.mxu0 0.0
  %191 = vmatprep.subr.mxu0 0.0
  %192 = vmatpush1.msra.mxu0 0.0
  %193 = vmatprep.subr.mxu0 0.0
  %194 = vmatpush1.msra.mxu0 0.0
  %195 = vmatprep.subr.mxu0 0.0
  %196 = vmatpush1.msra.mxu0 0.0
  %197 = vmatprep.subr.mxu0 0.0
  %198 = vmatpush1.msra.mxu0 0.0
  %199 = vmatprep.subr.mxu0 0.0
  %200 = vmatpush1.msra.mxu0 0.0
  %201 = vmatprep.subr.mxu0 0.0
  %202 = vmatpush1.msra.mxu0 0.0
  %203 = vmatprep.subr.mxu0 0.0
  %204 = vmatpush1.msra.mxu0 0.0
  %205 = vmatprep.subr.mxu0 0.0
  %206 = vmatpush1.msra.mxu0 0.0
  %207 = vmatprep.subr.mxu0 0.0
  %208 = vmatpush1.msra.mxu0 0.0
  %209 = vmatprep.subr.mxu0 0.0
  %210 = vmatpush1.msra.mxu0 0.0
  %211 = vmatprep.subr.mxu0 0.0
  %212 = vmatpush1.msra.mxu0 0.0
  %213 = vmatprep.subr.mxu0 0.0
  %214 = vmatpush1.msra.mxu0 0.0
  %215 = vmatprep.subr.mxu0 0.0
  %216 = vmatpush1.msra.mxu0 0.0
  %217 = vmatprep.subr.mxu0 0.0
  %218 = vmatpush1.msra.mxu0 0.0
  %219 = vmatprep.subr.mxu0 0.0
  %220 = vmatpush1.msra.mxu0 0.0
  %221 = vmatprep.subr.mxu0 0.0
  %222 = vmatpush1.msra.mxu0 0.0
  %223 = vmatprep.subr.mxu0 0.0
  %224 = vmatpush1.msra.mxu0 0.0
  %225 = vmatprep.subr.mxu0 0.0
  %226 = vmatpush1.msra.mxu0 0.0
  %227 = vmatprep.subr.mxu0 0.0
  %228 = vmatpush1.msra.mxu0 0.0
  %229 = vmatprep.subr.mxu0 0.0
  %230 = vmatpush1.msra.mxu0 0.0
  %231 = vmatprep.subr.mxu0 0.0
  %232 = vmatpush1.msra.mxu0 0.0
  %233 = vmatprep.subr.mxu0 0.0
  %234 = vmatpush1.msra.mxu0 0.0
  %235 = vmatprep.subr.mxu0 0.0
  %236 = vmatpush1.msra.mxu0 0.0
  %237 = vmatprep.subr.mxu0 0.0
  %238 = vmatpush1.msra.mxu0 0.0
  %239 = vmatprep.mubr.f32.mxu0 0.0
  %240 = vmatmul.mubr.f32.gmra.mrb[0].mxu0 %v170
  %v241 = vpop.f32.mrb[0].mxu0
  %v242 = vadd.f32 %v161, %v241
  %v243 = vpop.f32.mrb[0].mxu0
  %244 = vmatprep.mubr.f32.mxu0 0.0
  %245 = vmatmul.mubr.f32.gmra.mrb[0].mxu0 %v173
  %v246 = vpop.f32.mrb[0].mxu0
  %v247 = vadd.f32 %v166, %v246
  %v248 = vpop.f32.mrb[0].mxu0
  %249 = vdwg.mxu0
  %v250 = vld [vmem:[%s3] sm:$0xff]
  %v251 = vld [vmem:[%s3 + $0x8] sm:$0xff]
  %v252 = vld [vmem:[%s3 + $0x10] sm:$0xff]
  %v253 = vld [vmem:[%s3 + $0x18] sm:$0xff]
  %v255 = vsel %vm87, %v77, 0
  %v258 = vsel %vm87, %v78, 0
  %260 = vmatprep.subr.mxu0 0.0
  %261 = vmatpush1.msra.mxu0 %v250
  %262 = vmatprep.subr.mxu0 0.0
  %263 = vmatpush1.msra.mxu0 %v251
  %264 = vmatprep.subr.mxu0 0.0
  %265 = vmatpush1.msra.mxu0 %v252
  %266 = vmatprep.subr.mxu0 0.0
  %267 = vmatpush1.msra.mxu0 %v253
  %268 = vmatprep.subr.mxu0 0.0
  %269 = vmatpush1.msra.mxu0 0.0
  %270 = vmatprep.subr.mxu0 0.0
  %271 = vmatpush1.msra.mxu0 0.0
  %272 = vmatprep.subr.mxu0 0.0
  %273 = vmatpush1.msra.mxu0 0.0
  %274 = vmatprep.subr.mxu0 0.0
  %275 = vmatpush1.msra.mxu0 0.0
  %276 = vmatprep.subr.mxu0 0.0
  %277 = vmatpush1.msra.mxu0 0.0
  %278 = vmatprep.subr.mxu0 0.0
  %279 = vmatpush1.msra.mxu0 0.0
  %280 = vmatprep.subr.mxu0 0.0
  %281 = vmatpush1.msra.mxu0 0.0
  %282 = vmatprep.subr.mxu0 0.0
  %283 = vmatpush1.msra.mxu0 0.0
  %284 = vmatprep.subr.mxu0 0.0
  %285 = vmatpush1.msra.mxu0 0.0
  %286 = vmatprep.subr.mxu0 0.0
  %287 = vmatpush1.msra.mxu0 0.0
  %288 = vmatprep.subr.mxu0 0.0
  %289 = vmatpush1.msra.mxu0 0.0
  %290 = vmatprep.subr.mxu0 0.0
  %291 = vmatpush1.msra.mxu0 0.0
  %292 = vmatprep.subr.mxu0 0.0
  %293 = vmatpush1.msra.mxu0 0.0
  %294 = vmatprep.subr.mxu0 0.0
  %295 = vmatpush1.msra.mxu0 0.0
  %296 = vmatprep.subr.mxu0 0.0
  %297 = vmatpush1.msra.mxu0 0.0
  %298 = vmatprep.subr.mxu0 0.0
  %299 = vmatpush1.msra.mxu0 0.0
  %300 = vmatprep.subr.mxu0 0.0
  %301 = vmatpush1.msra.mxu0 0.0
  %302 = vmatprep.subr.mxu0 0.0
  %303 = vmatpush1.msra.mxu0 0.0
  %304 = vmatprep.subr.mxu0 0.0
  %305 = vmatpush1.msra.mxu0 0.0
  %306 = vmatprep.subr.mxu0 0.0
  %307 = vmatpush1.msra.mxu0 0.0
  %308 = vmatprep.subr.mxu0 0.0
  %309 = vmatpush1.msra.mxu0 0.0
  %310 = vmatprep.subr.mxu0 0.0
  %311 = vmatpush1.msra.mxu0 0.0
  %312 = vmatprep.subr.mxu0 0.0
  %313 = vmatpush1.msra.mxu0 0.0
  %314 = vmatprep.subr.mxu0 0.0
  %315 = vmatpush1.msra.mxu0 0.0
  %316 = vmatprep.subr.mxu0 0.0
  %317 = vmatpush1.msra.mxu0 0.0
  %318 = vmatprep.subr.mxu0 0.0
  %319 = vmatpush1.msra.mxu0 0.0
  %320 = vmatprep.subr.mxu0 0.0
  %321 = vmatpush1.msra.mxu0 0.0
  %322 = vmatprep.subr.mxu0 0.0
  %323 = vmatpush1.msra.mxu0 0.0
  %324 = vmatprep.mubr.f32.mxu0 0.0
  %325 = vmatmul.mubr.f32.gmra.mrb[0].mxu0 %v255
  %v326 = vpop.f32.mrb[0].mxu0
  %v327 = vadd.f32 0.0, %v326
  %v328 = vpop.f32.mrb[0].mxu0
  %329 = vmatprep.mubr.f32.mxu0 0.0
  %330 = vmatmul.mubr.f32.gmra.mrb[0].mxu0 %v258
  %v331 = vpop.f32.mrb[0].mxu0
  %v332 = vadd.f32 0.0, %v331
  %v333 = vpop.f32.mrb[0].mxu0
  %334 = vdwg.mxu0
  %v335 = vadd.f32 %v242, %v327
  %v336 = vadd.f32 %v247, %v332
  %v337 = vld [vmem:[%s4] sm:$0x1]
  %v339 = vlaneseq
  %v340 = vshrl.u32 %v339, 7
  %v341 = vsub.s32 0, %v340
  %v342 = vrot.slane %v337, %v341
  %v344 = vadd.f32 %v335, %v342
  %v345 = vadd.f32 %v336, %v342
  %v346 = vld [vmem:[%s5] sm:$0xff]
  %v347 = vld [vmem:[%s5 + $0x8] sm:$0xff]
  %v348 = vld [vmem:[%s5 + $0x10] sm:$0xff]
  %v349 = vld [vmem:[%s5 + $0x18] sm:$0xff]
  %v350 = vld [vmem:[%s6] sm:$0xff]
  %v351 = vld [vmem:[%s6 + $0x8] sm:$0xff]
  %v352 = vld [vmem:[%s6 + $0x10] sm:$0xff]
  %v353 = vld [vmem:[%s6 + $0x18] sm:$0xff]
  %355 = vset.pattern.permute.xlu0 0
  %356 = vperm.xlu0 %355, %v350
  %v357 = vpop.permute.xlu0 %356
  %360 = vset.pattern.permute.xlu0 0
  %361 = vperm.xlu0 %360, %v351
  %v362 = vpop.permute.xlu0 %361
  %365 = vset.pattern.permute.xlu0 0
  %366 = vperm.xlu0 %365, %v352
  %v367 = vpop.permute.xlu0 %366
  %370 = vset.pattern.permute.xlu0 0
  %371 = vperm.xlu0 %370, %v353
  %v372 = vpop.permute.xlu0 %371
  %vm374 = vcmask 130048
  %v376 = vsel %vm374, %v346, 0
  %v379 = vsel %vm374, %v347, 0
  %v382 = vsel %vm374, %v348, 0
  %v385 = vsel %vm374, %v349, 0
  %387 = vmatprep.subr.mxu0 0.0
  %388 = vmatpush1.msra.mxu0 %v344
  %389 = vmatprep.subr.mxu0 0.0
  %390 = vmatpush1.msra.mxu0 %v345
  %391 = vmatprep.subr.mxu0 0.0
  %392 = vmatpush1.msra.mxu0 0.0
  %393 = vmatprep.subr.mxu0 0.0
  %394 = vmatpush1.msra.mxu0 0.0
  %395 = vmatprep.subr.mxu0 0.0
  %396 = vmatpush1.msra.mxu0 0.0
  %397 = vmatprep.subr.mxu0 0.0
  %398 = vmatpush1.msra.mxu0 0.0
  %399 = vmatprep.subr.mxu0 0.0
  %400 = vmatpush1.msra.mxu0 0.0
  %401 = vmatprep.subr.mxu0 0.0
  %402 = vmatpush1.msra.mxu0 0.0
  %403 = vmatprep.subr.mxu0 0.0
  %404 = vmatpush1.msra.mxu0 0.0
  %405 = vmatprep.subr.mxu0 0.0
  %406 = vmatpush1.msra.mxu0 0.0
  %407 = vmatprep.subr.mxu0 0.0
  %408 = vmatpush1.msra.mxu0 0.0
  %409 = vmatprep.subr.mxu0 0.0
  %410 = vmatpush1.msra.mxu0 0.0
  %411 = vmatprep.subr.mxu0 0.0
  %412 = vmatpush1.msra.mxu0 0.0
  %413 = vmatprep.subr.mxu0 0.0
  %414 = vmatpush1.msra.mxu0 0.0
  %415 = vmatprep.subr.mxu0 0.0
  %416 = vmatpush1.msra.mxu0 0.0
  %417 = vmatprep.subr.mxu0 0.0
  %418 = vmatpush1.msra.mxu0 0.0
  %419 = vmatprep.subr.mxu0 0.0
  %420 = vmatpush1.msra.mxu0 0.0
  %421 = vmatprep.subr.mxu0 0.0
  %422 = vmatpush1.msra.mxu0 0.0
  %423 = vmatprep.subr.mxu0 0.0
  %424 = vmatpush1.msra.mxu0 0.0
  %425 = vmatprep.subr.mxu0 0.0
  %426 = vmatpush1.msra.mxu0 0.0
  %427 = vmatprep.subr.mxu0 0.0
  %428 = vmatpush1.msra.mxu0 0.0
  %429 = vmatprep.subr.mxu0 0.0
  %430 = vmatpush1.msra.mxu0 0.0
  %431 = vmatprep.subr.mxu0 0.0
  %432 = vmatpush1.msra.mxu0 0.0
  %433 = vmatprep.subr.mxu0 0.0
  %434 = vmatpush1.msra.mxu0 0.0
  %435 = vmatprep.subr.mxu0 0.0
  %436 = vmatpush1.msra.mxu0 0.0
  %437 = vmatprep.subr.mxu0 0.0
  %438 = vmatpush1.msra.mxu0 0.0
  %439 = vmatprep.subr.mxu0 0.0
  %440 = vmatpush1.msra.mxu0 0.0
  %441 = vmatprep.subr.mxu0 0.0
  %442 = vmatpush1.msra.mxu0 0.0
  %443 = vmatprep.subr.mxu0 0.0
  %444 = vmatpush1.msra.mxu0 0.0
  %445 = vmatprep.subr.mxu0 0.0
  %446 = vmatpush1.msra.mxu0 0.0
  %447 = vmatprep.subr.mxu0 0.0
  %448 = vmatpush1.msra.mxu0 0.0
  %449 = vmatprep.subr.mxu0 0.0
  %450 = vmatpush1.msra.mxu0 0.0
  %451 = vmatprep.mubr.f32.mxu0 0.0
  %452 = vmatmul.mubr.f32.gmra.mrb[0].mxu0 %v376
  %v453 = vpop.f32.mrb[0].mxu0
  %v454 = vadd.f32 %v357, %v453
  %v455 = vpop.f32.mrb[0].mxu0
  %456 = vmatprep.mubr.f32.mxu0 0.0
  %457 = vmatmul.mubr.f32.gmra.mrb[0].mxu0 %v379
  %v458 = vpop.f32.mrb[0].mxu0
  %v459 = vadd.f32 %v362, %v458
  %v460 = vpop.f32.mrb[0].mxu0
  %461 = vmatprep.mubr.f32.mxu0 0.0
  %462 = vmatmul.mubr.f32.gmra.mrb[0].mxu0 %v382
  %v463 = vpop.f32.mrb[0].mxu0
  %v464 = vadd.f32 %v367, %v463
  %v465 = vpop.f32.mrb[0].mxu0
  %466 = vmatprep.mubr.f32.mxu0 0.0
  %467 = vmatmul.mubr.f32.gmra.mrb[0].mxu0 %v385
  %v468 = vpop.f32.mrb[0].mxu0
  %v469 = vadd.f32 %v372, %v468
  %v470 = vpop.f32.mrb[0].mxu0
  %471 = vdwg.mxu0
  %v472 = vmax.f32 %v454, 0.0
  %v473 = vmax.f32 %v459, 0.0
  %v474 = vmax.f32 %v464, 0.0
  %v475 = vmax.f32 %v469, 0.0
  %v476 = vld [vmem:[%s7] sm:$0xff]
  %v477 = vld [vmem:[%s7 + $0x8] sm:$0xf]
  %v478 = vld [vmem:[%s8] sm:$0xff]
  %v479 = vld [vmem:[%s8 + $0x8] sm:$0xf]
  %481 = vset.pattern.permute.xlu0 0
  %482 = vperm.xlu0 %481, %v478
  %v483 = vpop.permute.xlu0 %482
  %486 = vset.pattern.permute.xlu0 0
  %487 = vperm.xlu0 %486, %v479
  %v488 = vpop.permute.xlu0 %487
  %v491 = vsel %vm87, %v476, 0
  %v494 = vsel %vm87, %v477, 0
  %496 = vmatprep.subr.mxu0 0.0
  %497 = vmatpush1.msra.mxu0 %v472
  %498 = vmatprep.subr.mxu0 0.0
  %499 = vmatpush1.msra.mxu0 %v473
  %500 = vmatprep.subr.mxu0 0.0
  %501 = vmatpush1.msra.mxu0 %v474
  %502 = vmatprep.subr.mxu0 0.0
  %503 = vmatpush1.msra.mxu0 %v475
  %504 = vmatprep.subr.mxu0 0.0
  %505 = vmatpush1.msra.mxu0 0.0
  %506 = vmatprep.subr.mxu0 0.0
  %507 = vmatpush1.msra.mxu0 0.0
  %508 = vmatprep.subr.mxu0 0.0
  %509 = vmatpush1.msra.mxu0 0.0
  %510 = vmatprep.subr.mxu0 0.0
  %511 = vmatpush1.msra.mxu0 0.0
  %512 = vmatprep.subr.mxu0 0.0
  %513 = vmatpush1.msra.mxu0 0.0
  %514 = vmatprep.subr.mxu0 0.0
  %515 = vmatpush1.msra.mxu0 0.0
  %516 = vmatprep.subr.mxu0 0.0
  %517 = vmatpush1.msra.mxu0 0.0
  %518 = vmatprep.subr.mxu0 0.0
  %519 = vmatpush1.msra.mxu0 0.0
  %520 = vmatprep.subr.mxu0 0.0
  %521 = vmatpush1.msra.mxu0 0.0
  %522 = vmatprep.subr.mxu0 0.0
  %523 = vmatpush1.msra.mxu0 0.0
  %524 = vmatprep.subr.mxu0 0.0
  %525 = vmatpush1.msra.mxu0 0.0
  %526 = vmatprep.subr.mxu0 0.0
  %527 = vmatpush1.msra.mxu0 0.0
  %528 = vmatprep.subr.mxu0 0.0
  %529 = vmatpush1.msra.mxu0 0.0
  %530 = vmatprep.subr.mxu0 0.0
  %531 = vmatpush1.msra.mxu0 0.0
  %532 = vmatprep.subr.mxu0 0.0
  %533 = vmatpush1.msra.mxu0 0.0
  %534 = vmatprep.subr.mxu0 0.0
  %535 = vmatpush1.msra.mxu0 0.0
  %536 = vmatprep.subr.mxu0 0.0
  %537 = vmatpush1.msra.mxu0 0.0
  %538 = vmatprep.subr.mxu0 0.0
  %539 = vmatpush1.msra.mxu0 0.0
  %540 = vmatprep.subr.mxu0 0.0
  %541 = vmatpush1.msra.mxu0 0.0
  %542 = vmatprep.subr.mxu0 0.0
  %543 = vmatpush1.msra.mxu0 0.0
  %544 = vmatprep.subr.mxu0 0.0
  %545 = vmatpush1.msra.mxu0 0.0
  %546 = vmatprep.subr.mxu0 0.0
  %547 = vmatpush1.msra.mxu0 0.0
  %548 = vmatprep.subr.mxu0 0.0
  %549 = vmatpush1.msra.mxu0 0.0
  %550 = vmatprep.subr.mxu0 0.0
  %551 = vmatpush1.msra.mxu0 0.0
  %552 = vmatprep.subr.mxu0 0.0
  %553 = vmatpush1.msra.mxu0 0.0
  %554 = vmatprep.subr.mxu0 0.0
  %555 = vmatpush1.msra.mxu0 0.0
  %556 = vmatprep.subr.mxu0 0.0
  %557 = vmatpush1.msra.mxu0 0.0
  %558 = vmatprep.subr.mxu0 0.0
  %559 = vmatpush1.msra.mxu0 0.0
  %560 = vmatprep.mubr.f32.mxu0 0.0
  %561 = vmatmul.mubr.f32.gmra.mrb[0].mxu0 %v491
  %v562 = vpop.f32.mrb[0].mxu0
  %v563 = vadd.f32 %v483, %v562
  %v564 = vpop.f32.mrb[0].mxu0
  %565 = vmatprep.mubr.f32.mxu0 0.0
  %566 = vmatmul.mubr.f32.gmra.mrb[0].mxu0 %v494
  %v567 = vpop.f32.mrb[0].mxu0
  %v568 = vadd.f32 %v488, %v567
  %v569 = vpop.f32.mrb[0].mxu0
  %570 = vdwg.mxu0
  %vm571 = vcmask 162816
  %572 = vst.msk [vmem:[%s9] sm:$0xff] %vm571, %v563
  %vm573 = vcmask 158720
  %574 = vst.msk [vmem:[%s9 + $0x8] sm:$0xf] %vm573, %v568
  // Predicated region
  $region38: #{outhead_traffic.1} parent=0 // pred_check
    _
  $region39: #{outhead_traffic.1} parent=0 // pred_check_branch
    %576 = sbr.rel (0) target = $region41
  $region40: #{outhead_traffic.1} parent=0 // pred_region
    _
  $region41: #{outhead_traffic.1} parent=0 // pred_fallthru
    _
  // Predicated region
  $region42: #{outhead_traffic.1} parent=0 // pred_check
    _
  $region43: #{outhead_traffic.1} parent=0 // pred_check_branch
    %578 = sbr.rel (0) target = $region45
  $region44: #{outhead_traffic.1} parent=0 // pred_region
    _
  $region45: #{outhead_traffic.1} parent=0 // pred_fallthru
    _

</llo_original>
